<compile_context>
chip_gen: v7x
topology: tpu7x:2x2x1
jax: 0.10.0
libtpu: 0.0.40
codegen_flags: <defaults>
</compile_context>

<pallas_src>
import functools

import numpy as np
import jax
import jax.numpy as jnp
from jax.experimental import pallas as pl
from jax.experimental.pallas import tpu as pltpu


def _fcu_down_kernel(x_ref, p_ref, w_ref, b_ref, g_ref, beta_ref, cls_ref, o_ref,
                     *, n_batch, c_in, c_out, n_pool, num_frames):
    # x_ref: (B*Cin, HW) bf16   p_ref: (HW, Np) bf16   w_ref: (Cin, C) bf16
    # b/g/beta: (1, C) f32      cls_ref: (B, 1, C)     o_ref: (B, 1+F*Np, C)

    # AvgPool2d(k=s, stride=s) applied BEFORE the 1x1 conv (both linear; every
    # pooling row sums to 1, so the conv bias moves after pooling -- exact).
    # bf16 operands, f32 accumulation; x is contracted along HW directly (no x.T).
    pooled = jnp.dot(x_ref[...], p_ref[...],
                     preferred_element_type=jnp.float32)            # (B*Cin, Np)

    # Regroup to (B*Np, Cin): only the small per-batch (Cin, Np) slab goes
    # through the XLU; conv/LN/GELU below run once, fused over all batches.
    xp = jnp.concatenate(
        [pooled[b * c_in:(b + 1) * c_in, :].T for b in range(n_batch)], axis=0)

    # 1x1 conv == channel matmul, all batches in a single MXU call.
    y = jnp.dot(xp.astype(jnp.bfloat16), w_ref[...],
                preferred_element_type=jnp.float32) + b_ref[...]    # (B*Np, C)

    # LayerNorm over channels (eps=1e-6, biased variance), centered two-pass stats.
    inv_c = jnp.float32(1.0 / c_out)
    mu = jnp.sum(y, axis=-1, keepdims=True) * inv_c
    d = y - mu
    var = jnp.sum(d * d, axis=-1, keepdims=True) * inv_c
    z = d * jax.lax.rsqrt(var + 1e-6) * g_ref[...] + beta_ref[...]

    # Exact (erf-based) GELU matching nn.GELU(); erf via A&S 7.1.26
    # (|err| < 1.5e-7).  The 1/(1+p|u|) reciprocal rides the EUP (approx) slot.
    u = z * jnp.float32(0.7071067811865476)
    au = jnp.abs(u)
    t = pl.reciprocal(1.0 + jnp.float32(0.3275911) * au, approx=True)
    poly = t * (0.254829592 + t * (-0.284496736 + t * (1.421413741
              + t * (-1.453152027 + t * 1.061405429))))
    erf_abs = 1.0 - poly * jnp.exp(-au * au)
    erf_u = jnp.where(u >= 0, erf_abs, -erf_abs)
    gelu = (0.5 * z * (1.0 + erf_u)).astype(o_ref.dtype)

    tokens = gelu.reshape(n_batch, n_pool, c_out)                   # (B, Np, C)

    # Final layout written straight from the kernel: class-token row 0, then the
    # single computed token block replicated into every frame slice.
    o_ref[:, 0:1, :] = cls_ref[...].astype(o_ref.dtype)
    for f in range(num_frames):                                     # static & tiny
        o_ref[:, 1 + f * n_pool:1 + (f + 1) * n_pool, :] = tokens


def fcu_down(x_nchw, x_t, params, dw_stride, num_frames):
    B, Cin, H, W = x_nchw.shape
    Cout = params["conv_w"].shape[0]
    s = dw_stride
    Hs, Ws = H // s, W // s
    HW, Np = H * W, Hs * Ws
    T_out = 1 + num_frames * Np

    # (B*Cin, HW) is a pure reshape of NCHW (no layout pass).  bf16 operands for
    # the MXU-native pooling matmul; accumulation stays f32 inside the kernel.
    x_r = x_nchw.reshape(B * Cin, HW).astype(jnp.bfloat16)

    # Constant average-pooling matrix, pre-transposed to (HW, Np) so the kernel
    # never transposes x.  1/s^2 is exact in bf16 for power-of-two strides.
    pool_np = np.zeros((H, W, Hs, Ws), np.float32)
    for ph in range(Hs):
        for pw in range(Ws):
            pool_np[ph * s:(ph + 1) * s, pw * s:(pw + 1) * s, ph, pw] = 1.0 / (s * s)
    pool_t = jnp.asarray(pool_np.reshape(HW, Np), dtype=jnp.bfloat16)

    w = params["conv_w"].reshape(Cout, Cin).T.astype(jnp.bfloat16)   # (Cin, Cout)
    bias = params["conv_b"].reshape(1, Cout).astype(jnp.float32)
    gamma = params["ln_w"].reshape(1, Cout).astype(jnp.float32)
    beta = params["ln_b"].reshape(1, Cout).astype(jnp.float32)
    cls = x_t[:, 0:1, :]                                             # (B, 1, Cout)

    kernel = functools.partial(_fcu_down_kernel, n_batch=B, c_in=Cin, c_out=Cout,
                               n_pool=Np, num_frames=num_frames)
    return pl.pallas_call(
        kernel,
        out_shape=jax.ShapeDtypeStruct((B, T_out, Cout), x_t.dtype),
        grid=(1,),                 # compute once; frame replication is in-block,
                                   # so every input is DMA'd exactly once.
        in_specs=[
            pl.BlockSpec((B * Cin, HW), lambda i: (0, 0)),      # x  (channel-major)
            pl.BlockSpec((HW, Np), lambda i: (0, 0)),           # pooling matrix^T
            pl.BlockSpec((Cin, Cout), lambda i: (0, 0)),        # conv weight
            pl.BlockSpec((1, Cout), lambda i: (0, 0)),          # conv bias
            pl.BlockSpec((1, Cout), lambda i: (0, 0)),          # LN gamma
            pl.BlockSpec((1, Cout), lambda i: (0, 0)),          # LN beta
            pl.BlockSpec((B, 1, Cout), lambda i: (0, 0, 0)),    # class token
        ],
        out_specs=pl.BlockSpec((B, T_out, Cout), lambda i: (0, 0, 0)),
        compiler_params=pltpu.CompilerParams(dimension_semantics=("arbitrary",)),
    )(x_r, pool_t, w, bias, gamma, beta, cls)


def _reference(x_nchw, x_t, params, dw_stride, num_frames):
    B, Cin, H, W = x_nchw.shape
    Cout = params["conv_w"].shape[0]
    s = dw_stride
    y = jnp.einsum("bchw,oc->bohw", x_nchw, params["conv_w"].reshape(Cout, Cin)) \
        + params["conv_b"][None, :, None, None]
    y = y.reshape(B, Cout, H // s, s, W // s, s).mean(axis=(3, 5))
    y = y.reshape(B, Cout, -1).transpose(0, 2, 1)
    mu = y.mean(-1, keepdims=True)
    var = ((y - mu) ** 2).mean(-1, keepdims=True)
    y = (y - mu) / jnp.sqrt(var + 1e-6) * params["ln_w"] + params["ln_b"]
    y = jax.nn.gelu(y, approximate=False)
    y = jnp.tile(y, (1, num_frames, 1))
    return jnp.concatenate([x_t[:, 0][:, None, :], y], axis=1)


if __name__ == "__main__":
    B, Cin, H, W = 2, 4, 16, 16          # x: NCHW
    Cout, dw_stride, num_frames = 32, 4, 3
    T = 10                                # transformer token count for x_t

    key = jax.random.PRNGKey(0)
    k1, k2, k3, k4 = jax.random.split(key, 4)
    x = jax.random.normal(k1, (B, Cin, H, W), jnp.float32)
    x_t = jax.random.normal(k2, (B, T, Cout), jnp.float32)
    params = {
        "conv_w": jax.random.normal(k3, (Cout, Cin, 1, 1), jnp.float32) * 0.1,
        "conv_b": jax.random.normal(k4, (Cout,), jnp.float32) * 0.1,
        "ln_w": jnp.ones((Cout,), jnp.float32),   # nn.LayerNorm default init
        "ln_b": jnp.zeros((Cout,), jnp.float32),
    }

    out = jax.block_until_ready(fcu_down(x, x_t, params, dw_stride, num_frames))
    ref = _reference(x, x_t, params, dw_stride, num_frames)

    Np = (H // dw_stride) * (W // dw_stride)
    assert out.shape == (B, 1 + num_frames * Np, Cout), out.shape
    # Tolerance accounts for bf16 MXU operands (input rounding is amplified by the
    # LayerNorm 1/sigma) and the EUP approx reciprocal in the GELU erf polynomial.
    err = float(jnp.max(jnp.abs(out - ref)))
    assert err < 5e-2, err
    print("KERNEL_OK")
</pallas_src>

<mosaic_0001>
module attributes {stable_mosaic.version = 11 : i64} {
  func.func @_fcu_down_kernel(%arg0: i32, %arg1: memref<8x256xbf16, #tpu.memory_space<vmem>>, %arg2: memref<256x16xbf16, #tpu.memory_space<vmem>>, %arg3: memref<4x32xbf16, #tpu.memory_space<vmem>>, %arg4: memref<1x32xf32, #tpu.memory_space<vmem>>, %arg5: memref<1x32xf32, #tpu.memory_space<vmem>>, %arg6: memref<1x32xf32, #tpu.memory_space<vmem>>, %arg7: memref<2x1x32xf32, #tpu.memory_space<vmem>>, %arg8: memref<2x49x32xf32, #tpu.memory_space<vmem>>) attributes {dimension_semantics = [#tpu.dimension_semantics<arbitrary>], iteration_bounds = array<i64: 1>, scalar_prefetch = 0 : i64, scratch_operands = 0 : i64, tpu.core_type = #tpu.core_type<tc>, window_params = [{pipeline_mode = #tpu.pipeline_mode<synchronous>, transform_indices = @transform_0, window_bounds = array<i64: 8, 256>}, {pipeline_mode = #tpu.pipeline_mode<synchronous>, transform_indices = @transform_1, window_bounds = array<i64: 256, 16>}, {pipeline_mode = #tpu.pipeline_mode<synchronous>, transform_indices = @transform_2, window_bounds = array<i64: 4, 32>}, {pipeline_mode = #tpu.pipeline_mode<synchronous>, transform_indices = @transform_3, window_bounds = array<i64: 1, 32>}, {pipeline_mode = #tpu.pipeline_mode<synchronous>, transform_indices = @transform_4, window_bounds = array<i64: 1, 32>}, {pipeline_mode = #tpu.pipeline_mode<synchronous>, transform_indices = @transform_5, window_bounds = array<i64: 1, 32>}, {pipeline_mode = #tpu.pipeline_mode<synchronous>, transform_indices = @transform_6, window_bounds = array<i64: 2, 1, 32>}, {pipeline_mode = #tpu.pipeline_mode<synchronous>, transform_indices = @transform_7, window_bounds = array<i64: 2, 49, 32>}]} {
    %c0 = arith.constant 0 : index
    %c0_0 = arith.constant 0 : index
    %0 = vector.load %arg1[%c0, %c0_0] : memref<8x256xbf16, #tpu.memory_space<vmem>>, vector<8x256xbf16>
    %c0_1 = arith.constant 0 : index
    %c0_2 = arith.constant 0 : index
    %1 = vector.load %arg2[%c0_1, %c0_2] : memref<256x16xbf16, #tpu.memory_space<vmem>>, vector<256x16xbf16>
    %cst = arith.constant dense<0.000000e+00> : vector<8x16xf32>
    %2 = tpu.matmul %0, %1, %cst {dimension_numbers = #tpu.dot_dimension_numbers<[1], [0], [0], [1], [0, 0, 1, 1], [], []>} : vector<8x256xbf16>, vector<256x16xbf16>, vector<8x16xf32> -> vector<8x16xf32>
    %3 = vector.extract_strided_slice %2 {offsets = [0, 0], sizes = [4, 16], strides = [1, 1]} : vector<8x16xf32> to vector<4x16xf32>
    %4 = tpu.transpose %3, [1, 0] : vector<4x16xf32> -> vector<16x4xf32>
    %5 = vector.extract_strided_slice %2 {offsets = [4, 0], sizes = [4, 16], strides = [1, 1]} : vector<8x16xf32> to vector<4x16xf32>
    %6 = tpu.transpose %5, [1, 0] : vector<4x16xf32> -> vector<16x4xf32>
    %7 = tpu.concatenate %4, %6 in 0 : vector<16x4xf32>, vector<16x4xf32> -> vector<32x4xf32>
    %8 = arith.truncf %7 : vector<32x4xf32> to vector<32x4xbf16>
    %c0_3 = arith.constant 0 : index
    %c0_4 = arith.constant 0 : index
    %9 = vector.load %arg3[%c0_3, %c0_4] : memref<4x32xbf16, #tpu.memory_space<vmem>>, vector<4x32xbf16>
    %cst_5 = arith.constant dense<0.000000e+00> : vector<32x32xf32>
    %10 = tpu.matmul %8, %9, %cst_5 {dimension_numbers = #tpu.dot_dimension_numbers<[1], [0], [0], [1], [0, 0, 1, 1], [], []>} : vector<32x4xbf16>, vector<4x32xbf16>, vector<32x32xf32> -> vector<32x32xf32>
    %c0_6 = arith.constant 0 : index
    %c0_7 = arith.constant 0 : index
    %11 = vector.load %arg4[%c0_6, %c0_7] : memref<1x32xf32, #tpu.memory_space<vmem>>, vector<1x32xf32>
    %12 = vector.broadcast %11 : vector<1x32xf32> to vector<32x32xf32>
    %13 = arith.addf %10, %12 : vector<32x32xf32>
    %cst_8 = arith.constant dense<0.000000e+00> : vector<32xf32>
    %14 = vector.multi_reduction <add>, %13, %cst_8 [1] : vector<32x32xf32> to vector<32xf32>
    %15 = vector.shape_cast %14 : vector<32xf32> to vector<32x1xf32>
    %cst_9 = arith.constant 3.125000e-02 : f32
    %16 = vector.broadcast %cst_9 : f32 to vector<32x1xf32>
    %17 = arith.mulf %15, %16 : vector<32x1xf32>
    %18 = vector.broadcast %17 : vector<32x1xf32> to vector<32x32xf32>
    %19 = arith.subf %13, %18 : vector<32x32xf32>
    %20 = arith.mulf %19, %19 : vector<32x32xf32>
    %cst_10 = arith.constant dense<0.000000e+00> : vector<32xf32>
    %21 = vector.multi_reduction <add>, %20, %cst_10 [1] : vector<32x32xf32> to vector<32xf32>
    %22 = vector.shape_cast %21 : vector<32xf32> to vector<32x1xf32>
    %cst_11 = arith.constant 3.125000e-02 : f32
    %23 = vector.broadcast %cst_11 : f32 to vector<32x1xf32>
    %24 = arith.mulf %22, %23 : vector<32x1xf32>
    %cst_12 = arith.constant 9.99999997E-7 : f32
    %25 = vector.broadcast %cst_12 : f32 to vector<32x1xf32>
    %26 = arith.addf %24, %25 : vector<32x1xf32>
    %27 = math.rsqrt %26 : vector<32x1xf32>
    %28 = vector.broadcast %27 : vector<32x1xf32> to vector<32x32xf32>
    %29 = arith.mulf %19, %28 : vector<32x32xf32>
    %c0_13 = arith.constant 0 : index
    %c0_14 = arith.constant 0 : index
    %30 = vector.load %arg5[%c0_13, %c0_14] : memref<1x32xf32, #tpu.memory_space<vmem>>, vector<1x32xf32>
    %31 = vector.broadcast %30 : vector<1x32xf32> to vector<32x32xf32>
    %32 = arith.mulf %29, %31 : vector<32x32xf32>
    %c0_15 = arith.constant 0 : index
    %c0_16 = arith.constant 0 : index
    %33 = vector.load %arg6[%c0_15, %c0_16] : memref<1x32xf32, #tpu.memory_space<vmem>>, vector<1x32xf32>
    %34 = vector.broadcast %33 : vector<1x32xf32> to vector<32x32xf32>
    %35 = arith.addf %32, %34 : vector<32x32xf32>
    %cst_17 = arith.constant 0.707106769 : f32
    %36 = vector.broadcast %cst_17 : f32 to vector<32x32xf32>
    %37 = arith.mulf %35, %36 : vector<32x32xf32>
    %38 = math.absf %37 : vector<32x32xf32>
    %cst_18 = arith.constant 0.327591091 : f32
    %39 = vector.broadcast %cst_18 : f32 to vector<32x32xf32>
    %40 = arith.mulf %39, %38 : vector<32x32xf32>
    %cst_19 = arith.constant 1.000000e+00 : f32
    %41 = vector.broadcast %cst_19 : f32 to vector<32x32xf32>
    %42 = arith.addf %41, %40 : vector<32x32xf32>
    %43 = tpu.reciprocal %42 {approx = true} : vector<32x32xf32> -> vector<32x32xf32>
    %cst_20 = arith.constant 1.06140542 : f32
    %44 = vector.broadcast %cst_20 : f32 to vector<32x32xf32>
    %45 = arith.mulf %43, %44 : vector<32x32xf32>
    %cst_21 = arith.constant -1.45315206 : f32
    %46 = vector.broadcast %cst_21 : f32 to vector<32x32xf32>
    %47 = arith.addf %46, %45 : vector<32x32xf32>
    %48 = arith.mulf %43, %47 : vector<32x32xf32>
    %cst_22 = arith.constant 1.42141378 : f32
    %49 = vector.broadcast %cst_22 : f32 to vector<32x32xf32>
    %50 = arith.addf %49, %48 : vector<32x32xf32>
    %51 = arith.mulf %43, %50 : vector<32x32xf32>
    %cst_23 = arith.constant -0.284496725 : f32
    %52 = vector.broadcast %cst_23 : f32 to vector<32x32xf32>
    %53 = arith.addf %52, %51 : vector<32x32xf32>
    %54 = arith.mulf %43, %53 : vector<32x32xf32>
    %cst_24 = arith.constant 0.254829586 : f32
    %55 = vector.broadcast %cst_24 : f32 to vector<32x32xf32>
    %56 = arith.addf %55, %54 : vector<32x32xf32>
    %57 = arith.mulf %43, %56 : vector<32x32xf32>
    %cst_25 = arith.constant 0.000000e+00 : f32
    %58 = vector.broadcast %cst_25 : f32 to vector<32x32xf32>
    %59 = arith.subf %58, %38 : vector<32x32xf32>
    %60 = arith.mulf %59, %38 : vector<32x32xf32>
    %61 = math.exp %60 : vector<32x32xf32>
    %62 = arith.mulf %57, %61 : vector<32x32xf32>
    %cst_26 = arith.constant 1.000000e+00 : f32
    %63 = vector.broadcast %cst_26 : f32 to vector<32x32xf32>
    %64 = arith.subf %63, %62 : vector<32x32xf32>
    %cst_27 = arith.constant 0.000000e+00 : f32
    %65 = vector.broadcast %cst_27 : f32 to vector<32x32xf32>
    %66 = arith.cmpf oge, %37, %65 : vector<32x32xf32>
    %cst_28 = arith.constant 0.000000e+00 : f32
    %67 = vector.broadcast %cst_28 : f32 to vector<32x32xf32>
    %68 = arith.subf %67, %64 : vector<32x32xf32>
    %69 = arith.select %66, %64, %68 : vector<32x32xi1>, vector<32x32xf32>
    %cst_29 = arith.constant 5.000000e-01 : f32
    %70 = vector.broadcast %cst_29 : f32 to vector<32x32xf32>
    %71 = arith.mulf %70, %35 : vector<32x32xf32>
    %cst_30 = arith.constant 1.000000e+00 : f32
    %72 = vector.broadcast %cst_30 : f32 to vector<32x32xf32>
    %73 = arith.addf %72, %69 : vector<32x32xf32>
    %74 = arith.mulf %71, %73 : vector<32x32xf32>
    %75 = vector.shape_cast %74 : vector<32x32xf32> to vector<2x16x32xf32>
    %c0_31 = arith.constant 0 : index
    %c0_32 = arith.constant 0 : index
    %c0_33 = arith.constant 0 : index
    %76 = vector.load %arg7[%c0_31, %c0_32, %c0_33] : memref<2x1x32xf32, #tpu.memory_space<vmem>>, vector<2x1x32xf32>
    %c0_34 = arith.constant 0 : index
    %c0_35 = arith.constant 0 : index
    %c0_36 = arith.constant 0 : index
    %77 = vector.load %arg8[%c0_34, %c0_35, %c0_36] : memref<2x49x32xf32, #tpu.memory_space<vmem>>, vector<2x1x32xf32>
    tpu.vector_store %arg8[%c0_34, %c0_35, %c0_36], %76 {strides = array<i32>} : memref<2x49x32xf32, #tpu.memory_space<vmem>>, vector<2x1x32xf32>,
    %c0_37 = arith.constant 0 : index
    %c1 = arith.constant 1 : index
    %c0_38 = arith.constant 0 : index
    %78 = vector.load %arg8[%c0_37, %c1, %c0_38] : memref<2x49x32xf32, #tpu.memory_space<vmem>>, vector<2x16x32xf32>
    tpu.vector_store %arg8[%c0_37, %c1, %c0_38], %75 {strides = array<i32>} : memref<2x49x32xf32, #tpu.memory_space<vmem>>, vector<2x16x32xf32>,
    %c0_39 = arith.constant 0 : index
    %c17 = arith.constant 17 : index
    %c0_40 = arith.constant 0 : index
    %79 = vector.load %arg8[%c0_39, %c17, %c0_40] : memref<2x49x32xf32, #tpu.memory_space<vmem>>, vector<2x16x32xf32>
    tpu.vector_store %arg8[%c0_39, %c17, %c0_40], %75 {strides = array<i32>} : memref<2x49x32xf32, #tpu.memory_space<vmem>>, vector<2x16x32xf32>,
    %c0_41 = arith.constant 0 : index
    %c33 = arith.constant 33 : index
    %c0_42 = arith.constant 0 : index
    %80 = vector.load %arg8[%c0_41, %c33, %c0_42] : memref<2x49x32xf32, #tpu.memory_space<vmem>>, vector<2x16x32xf32>
    tpu.vector_store %arg8[%c0_41, %c33, %c0_42], %75 {strides = array<i32>} : memref<2x49x32xf32, #tpu.memory_space<vmem>>, vector<2x16x32xf32>,
    return
  }
  func.func @transform_0(%arg0: i32) -> (i32, i32) {
    %c0_i32 = arith.constant 0 : i32
    %c0_i32_0 = arith.constant 0 : i32
    %c0_i32_1 = arith.constant 0 : i32
    return %c0_i32, %c0_i32_0 : i32, i32
  }
  func.func @transform_1(%arg0: i32) -> (i32, i32) {
    %c0_i32 = arith.constant 0 : i32
    %c0_i32_0 = arith.constant 0 : i32
    %c0_i32_1 = arith.constant 0 : i32
    return %c0_i32, %c0_i32_0 : i32, i32
  }
  func.func @transform_2(%arg0: i32) -> (i32, i32) {
    %c0_i32 = arith.constant 0 : i32
    %c0_i32_0 = arith.constant 0 : i32
    %c0_i32_1 = arith.constant 0 : i32
    return %c0_i32, %c0_i32_0 : i32, i32
  }
  func.func @transform_3(%arg0: i32) -> (i32, i32) {
    %c0_i32 = arith.constant 0 : i32
    %c0_i32_0 = arith.constant 0 : i32
    %c0_i32_1 = arith.constant 0 : i32
    return %c0_i32, %c0_i32_0 : i32, i32
  }
  func.func @transform_4(%arg0: i32) -> (i32, i32) {
    %c0_i32 = arith.constant 0 : i32
    %c0_i32_0 = arith.constant 0 : i32
    %c0_i32_1 = arith.constant 0 : i32
    return %c0_i32, %c0_i32_0 : i32, i32
  }
  func.func @transform_5(%arg0: i32) -> (i32, i32) {
    %c0_i32 = arith.constant 0 : i32
    %c0_i32_0 = arith.constant 0 : i32
    %c0_i32_1 = arith.constant 0 : i32
    return %c0_i32, %c0_i32_0 : i32, i32
  }
  func.func @transform_6(%arg0: i32) -> (i32, i32, i32) {
    %c0_i32 = arith.constant 0 : i32
    %c0_i32_0 = arith.constant 0 : i32
    %c0_i32_1 = arith.constant 0 : i32
    %c0_i32_2 = arith.constant 0 : i32
    return %c0_i32, %c0_i32_0, %c0_i32_1 : i32, i32, i32
  }
  func.func @transform_7(%arg0: i32) -> (i32, i32, i32) {
    %c0_i32 = arith.constant 0 : i32
    %c0_i32_0 = arith.constant 0 : i32
    %c0_i32_1 = arith.constant 0 : i32
    %c0_i32_2 = arith.constant 0 : i32
    return %c0_i32, %c0_i32_0, %c0_i32_1 : i32, i32, i32
  }
}

</mosaic_0001>

<llo_original>
// kernel: tpu_custom_call.1
$region0: #{tpu_custom_call.1}
  #allocation0 [shape = 'u32[]', space=smem, size = 0x4, offset = 0x4, fixed_abs, tag = 'smem constant byte address 0x4 - core index']
  #allocation1 [shape = 'u32[144,128]{1,0:T(1,128)}', space=vmem, size = 0x12000, scoped, tag = 'internal scratch']
  %s0 = inlined_call_operand.vmem [shape: bf16[8,256], index: 0, kind: input, shape index: {}]
  %s1 = inlined_call_operand.vmem [shape: bf16[256,16], index: 1, kind: input, shape index: {}]
  %s2 = inlined_call_operand.vmem [shape: bf16[4,32], index: 2, kind: input, shape index: {}]
  %s3 = inlined_call_operand.vmem [shape: f32[1,32], index: 3, kind: input, shape index: {}]
  %s4 = inlined_call_operand.vmem [shape: f32[1,32], index: 4, kind: input, shape index: {}]
  %s5 = inlined_call_operand.vmem [shape: f32[1,32], index: 5, kind: input, shape index: {}]
  %s6 = inlined_call_operand.vmem [shape: f32[2,1,32], index: 6, kind: input, shape index: {}]
  %s7 = inlined_call_operand.vmem [shape: f32[2,49,32], index: 7, kind: output, shape index: {}]
  %s8 = sld [smem:[#allocation0]]
  $region38: #{tpu_custom_call.1} parent=0
    _
  %s10 = ssub.s32 1, %s8
  %s11 = scalar_select 0, %s10, %s8
  // Predicated region
  $region2: #{tpu_custom_call.1} parent=0 // pred_check
    _
  $region3: #{tpu_custom_call.1} parent=0 // pred_check_branch
    %13 = sbr.rel (0) target = $region5
  $region4: #{tpu_custom_call.1} parent=0 // pred_region
    _
  $region5: #{tpu_custom_call.1} parent=0 // pred_fallthru
    _
  // Predicated region
  $region6: #{tpu_custom_call.1} parent=0 // pred_check
    _
  $region7: #{tpu_custom_call.1} parent=0 // pred_check_branch
    %15 = sbr.rel (0) target = $region9
  $region8: #{tpu_custom_call.1} parent=0 // pred_region
    _
  $region9: #{tpu_custom_call.1} parent=0 // pred_fallthru
    _
  // Predicated region
  $region10: #{tpu_custom_call.1} parent=0 // pred_check
    _
  $region11: #{tpu_custom_call.1} parent=0 // pred_check_branch
    %17 = sbr.rel (0) target = $region13
  $region12: #{tpu_custom_call.1} parent=0 // pred_region
    _
  $region13: #{tpu_custom_call.1} parent=0 // pred_fallthru
    _
  // Predicated region
  $region14: #{tpu_custom_call.1} parent=0 // pred_check
    _
  $region15: #{tpu_custom_call.1} parent=0 // pred_check_branch
    %19 = sbr.rel (0) target = $region17
  $region16: #{tpu_custom_call.1} parent=0 // pred_region
    _
  $region17: #{tpu_custom_call.1} parent=0 // pred_fallthru
    _
  // Predicated region
  $region18: #{tpu_custom_call.1} parent=0 // pred_check
    _
  $region19: #{tpu_custom_call.1} parent=0 // pred_check_branch
    %21 = sbr.rel (0) target = $region21
  $region20: #{tpu_custom_call.1} parent=0 // pred_region
    _
  $region21: #{tpu_custom_call.1} parent=0 // pred_fallthru
    _
  // Predicated region
  $region22: #{tpu_custom_call.1} parent=0 // pred_check
    _
  $region23: #{tpu_custom_call.1} parent=0 // pred_check_branch
    %23 = sbr.rel (0) target = $region25
  $region24: #{tpu_custom_call.1} parent=0 // pred_region
    _
  $region25: #{tpu_custom_call.1} parent=0 // pred_fallthru
    _
  // Predicated region
  $region26: #{tpu_custom_call.1} parent=0 // pred_check
    _
  $region27: #{tpu_custom_call.1} parent=0 // pred_check_branch
    %25 = sbr.rel (0) target = $region29
  $region28: #{tpu_custom_call.1} parent=0 // pred_region
    _
  $region29: #{tpu_custom_call.1} parent=0 // pred_fallthru
    _
  %v27 = vld [vmem:[%s0] sm:$0xff]
  %v28 = vld [vmem:[%s1] sm:$0xf]
  %v29 = vld [vmem:[%s1 + $0x4] sm:$0xf]
  %v30 = vld [vmem:[%s1 + $0x8] sm:$0xf]
  %v31 = vld [vmem:[%s1 + $0xc] sm:$0xf]
  %v32 = vld [vmem:[%s1 + $0x10] sm:$0xf]
  %v33 = vld [vmem:[%s1 + $0x14] sm:$0xf]
  %v34 = vld [vmem:[%s1 + $0x18] sm:$0xf]
  %v35 = vld [vmem:[%s1 + $0x1c] sm:$0xf]
  %v36 = vld [vmem:[%s1 + $0x20] sm:$0xf]
  %v37 = vld [vmem:[%s1 + $0x24] sm:$0xf]
  %v38 = vld [vmem:[%s1 + $0x28] sm:$0xf]
  %v39 = vld [vmem:[%s1 + $0x2c] sm:$0xf]
  %v40 = vld [vmem:[%s1 + $0x30] sm:$0xf]
  %v41 = vld [vmem:[%s1 + $0x34] sm:$0xf]
  %v42 = vld [vmem:[%s1 + $0x38] sm:$0xf]
  %v43 = vld [vmem:[%s1 + $0x3c] sm:$0xf]
  %v44 = vld [vmem:[%s1 + $0x40] sm:$0xf]
  %v45 = vld [vmem:[%s1 + $0x44] sm:$0xf]
  %v46 = vld [vmem:[%s1 + $0x48] sm:$0xf]
  %v47 = vld [vmem:[%s1 + $0x4c] sm:$0xf]
  %v48 = vld [vmem:[%s1 + $0x50] sm:$0xf]
  %v49 = vld [vmem:[%s1 + $0x54] sm:$0xf]
  %v50 = vld [vmem:[%s1 + $0x58] sm:$0xf]
  %v51 = vld [vmem:[%s1 + $0x5c] sm:$0xf]
  %v52 = vld [vmem:[%s1 + $0x60] sm:$0xf]
  %v53 = vld [vmem:[%s1 + $0x64] sm:$0xf]
  %v54 = vld [vmem:[%s1 + $0x68] sm:$0xf]
  %v55 = vld [vmem:[%s1 + $0x6c] sm:$0xf]
  %v56 = vld [vmem:[%s1 + $0x70] sm:$0xf]
  %v57 = vld [vmem:[%s1 + $0x74] sm:$0xf]
  %v58 = vld [vmem:[%s1 + $0x78] sm:$0xf]
  %v59 = vld [vmem:[%s1 + $0x7c] sm:$0xf]
  %v61 = vunpack.c.l.b16 %v27
  %v62 = vunpack.c.h.b16 %v27
  %v63 = vpack.c.b16 %v61, %v61
  %v64 = vpack.c.b16 %v62, %v62
  %v99 = vunpack.c.l.b16 %v28
  %v100 = vunpack.c.l.b16 %v29
  %v101 = vunpack.c.l.b16 %v30
  %v102 = vunpack.c.l.b16 %v31
  %v103 = vunpack.c.l.b16 %v32
  %v104 = vunpack.c.l.b16 %v33
  %v105 = vunpack.c.l.b16 %v34
  %v106 = vunpack.c.l.b16 %v35
  %v107 = vunpack.c.l.b16 %v36
  %v108 = vunpack.c.l.b16 %v37
  %v109 = vunpack.c.l.b16 %v38
  %v110 = vunpack.c.l.b16 %v39
  %v111 = vunpack.c.l.b16 %v40
  %v112 = vunpack.c.l.b16 %v41
  %v113 = vunpack.c.l.b16 %v42
  %v114 = vunpack.c.l.b16 %v43
  %v115 = vunpack.c.l.b16 %v44
  %v116 = vunpack.c.l.b16 %v45
  %v117 = vunpack.c.l.b16 %v46
  %v118 = vunpack.c.l.b16 %v47
  %v119 = vunpack.c.l.b16 %v48
  %v120 = vunpack.c.l.b16 %v49
  %v121 = vunpack.c.l.b16 %v50
  %v122 = vunpack.c.l.b16 %v51
  %v123 = vunpack.c.l.b16 %v52
  %v124 = vunpack.c.l.b16 %v53
  %v125 = vunpack.c.l.b16 %v54
  %v126 = vunpack.c.l.b16 %v55
  %v127 = vunpack.c.l.b16 %v56
  %v128 = vunpack.c.l.b16 %v57
  %v129 = vunpack.c.l.b16 %v58
  %v130 = vunpack.c.l.b16 %v59
  %v131 = vpack.c.b16 %v100, %v99
  %v132 = vpack.c.b16 %v102, %v101
  %v133 = vpack.c.b16 %v104, %v103
  %v134 = vpack.c.b16 %v106, %v105
  %v135 = vpack.c.b16 %v108, %v107
  %v136 = vpack.c.b16 %v110, %v109
  %v137 = vpack.c.b16 %v112, %v111
  %v138 = vpack.c.b16 %v114, %v113
  %v139 = vpack.c.b16 %v116, %v115
  %v140 = vpack.c.b16 %v118, %v117
  %v141 = vpack.c.b16 %v120, %v119
  %v142 = vpack.c.b16 %v122, %v121
  %v143 = vpack.c.b16 %v124, %v123
  %v144 = vpack.c.b16 %v126, %v125
  %v145 = vpack.c.b16 %v128, %v127
  %v146 = vpack.c.b16 %v130, %v129
  %163 = vmatprep.subr.bf16.mxu0 0
  %164 = vmatpush1.bf16.msra.mxu0 %v131
  %165 = vmatprep.subr.bf16.mxu0 0
  %166 = vmatpush1.bf16.msra.mxu0 %v132
  %167 = vmatprep.subr.bf16.mxu0 0
  %168 = vmatpush1.bf16.msra.mxu0 %v133
  %169 = vmatprep.subr.bf16.mxu0 0
  %170 = vmatpush1.bf16.msra.mxu0 %v134
  %171 = vmatprep.subr.bf16.mxu0 0
  %172 = vmatpush1.bf16.msra.mxu0 %v135
  %173 = vmatprep.subr.bf16.mxu0 0
  %174 = vmatpush1.bf16.msra.mxu0 %v136
  %175 = vmatprep.subr.bf16.mxu0 0
  %176 = vmatpush1.bf16.msra.mxu0 %v137
  %177 = vmatprep.subr.bf16.mxu0 0
  %178 = vmatpush1.bf16.msra.mxu0 %v138
  %179 = vmatprep.subr.bf16.mxu0 0
  %180 = vmatpush1.bf16.msra.mxu0 %v139
  %181 = vmatprep.subr.bf16.mxu0 0
  %182 = vmatpush1.bf16.msra.mxu0 %v140
  %183 = vmatprep.subr.bf16.mxu0 0
  %184 = vmatpush1.bf16.msra.mxu0 %v141
  %185 = vmatprep.subr.bf16.mxu0 0
  %186 = vmatpush1.bf16.msra.mxu0 %v142
  %187 = vmatprep.subr.bf16.mxu0 0
  %188 = vmatpush1.bf16.msra.mxu0 %v143
  %189 = vmatprep.subr.bf16.mxu0 0
  %190 = vmatpush1.bf16.msra.mxu0 %v144
  %191 = vmatprep.subr.bf16.mxu0 0
  %192 = vmatpush1.bf16.msra.mxu0 %v145
  %193 = vmatprep.subr.bf16.mxu0 0
  %194 = vmatpush1.bf16.msra.mxu0 %v146
  %195 = vmatprep.mubr.bf16.mxu0 %v64
  %196 = vmatmul.mubr.bf16.gmra.mrb[0].mxu0 %v63
  %v197 = vpop.f32.mrb[0].mxu0
  %v198 = vadd.f32 0.0, %v197
  %v199 = vpop.f32.mrb[0].mxu0
  %v200 = vpop.f32.mrb[0].mxu0
  %v201 = vpop.f32.mrb[0].mxu0
  %202 = vdwg.mxu0
  %203 = vxpose.xlu0.b32.start [1/16] %v198, 128
  %204 = vxpose.xlu0.b32.cont [2/16] 0.0, 128
  %205 = vxpose.xlu0.b32.cont [3/16] 0.0, 128
  %206 = vxpose.xlu0.b32.cont [4/16] 0.0, 128
  %207 = vxpose.xlu0.b32.cont [5/16] 0.0, 128
  %208 = vxpose.xlu0.b32.cont [6/16] 0.0, 128
  %209 = vxpose.xlu0.b32.cont [7/16] 0.0, 128
  %210 = vxpose.xlu0.b32.cont [8/16] 0.0, 128
  %211 = vxpose.xlu0.b32.cont [9/16] 0.0, 128
  %212 = vxpose.xlu0.b32.cont [10/16] 0.0, 128
  %213 = vxpose.xlu0.b32.cont [11/16] 0.0, 128
  %214 = vxpose.xlu0.b32.cont [12/16] 0.0, 128
  %215 = vxpose.xlu0.b32.cont [13/16] 0.0, 128
  %216 = vxpose.xlu0.b32.cont [14/16] 0.0, 128
  %217 = vxpose.xlu0.b32.cont [15/16] 0.0, 128
  %218 = vxpose.xlu0.b32.end [16/16] 0.0, 128
  %v219 = vpop.trf.xlu0
  %v220 = vpop.trf.xlu0
  %v221 = vpop.trf.xlu0
  %v222 = vpop.trf.xlu0
  %v223 = vpop.trf.xlu0
  %v224 = vpop.trf.xlu0
  %v225 = vpop.trf.xlu0
  %v226 = vpop.trf.xlu0
  %v227 = vpop.trf.xlu0
  %v228 = vpop.trf.xlu0
  %v229 = vpop.trf.xlu0
  %v230 = vpop.trf.xlu0
  %v231 = vpop.trf.xlu0
  %v232 = vpop.trf.xlu0
  %v233 = vpop.trf.xlu0
  %v234 = vpop.trf.xlu0
  %v236 = vrot.slane %v198, 4
  %238 = vxpose.xlu0.b32.start [1/16] %v236, 128
  %239 = vxpose.xlu0.b32.cont [2/16] 0.0, 128
  %240 = vxpose.xlu0.b32.cont [3/16] 0.0, 128
  %241 = vxpose.xlu0.b32.cont [4/16] 0.0, 128
  %242 = vxpose.xlu0.b32.cont [5/16] 0.0, 128
  %243 = vxpose.xlu0.b32.cont [6/16] 0.0, 128
  %244 = vxpose.xlu0.b32.cont [7/16] 0.0, 128
  %245 = vxpose.xlu0.b32.cont [8/16] 0.0, 128
  %246 = vxpose.xlu0.b32.cont [9/16] 0.0, 128
  %247 = vxpose.xlu0.b32.cont [10/16] 0.0, 128
  %248 = vxpose.xlu0.b32.cont [11/16] 0.0, 128
  %249 = vxpose.xlu0.b32.cont [12/16] 0.0, 128
  %250 = vxpose.xlu0.b32.cont [13/16] 0.0, 128
  %251 = vxpose.xlu0.b32.cont [14/16] 0.0, 128
  %252 = vxpose.xlu0.b32.cont [15/16] 0.0, 128
  %253 = vxpose.xlu0.b32.end [16/16] 0.0, 128
  %v254 = vpop.trf.xlu0
  %v255 = vpop.trf.xlu0
  %v256 = vpop.trf.xlu0
  %v257 = vpop.trf.xlu0
  %v258 = vpop.trf.xlu0
  %v259 = vpop.trf.xlu0
  %v260 = vpop.trf.xlu0
  %v261 = vpop.trf.xlu0
  %v262 = vpop.trf.xlu0
  %v263 = vpop.trf.xlu0
  %v264 = vpop.trf.xlu0
  %v265 = vpop.trf.xlu0
  %v266 = vpop.trf.xlu0
  %v267 = vpop.trf.xlu0
  %v268 = vpop.trf.xlu0
  %v269 = vpop.trf.xlu0
  %v270 = vpack.c.bf16 %v220, %v219
  %v271 = vpack.c.bf16 %v255, %v254
  %v272 = vld [vmem:[%s2] sm:$0x3]
  %v273 = vld [vmem:[%s3] sm:$0x1]
  %v275 = vlaneseq
  %v276 = vshrl.u32 %v275, 7
  %v277 = vsub.s32 0, %v276
  %v278 = vrot.slane %v273, %v277
  %vm280 = vcmask 31744
  %v282 = vsel %vm280, %v270, 0
  %v285 = vsel %vm280, %v271, 0
  %vm287 = vcmask 1041408
  %v289 = vsel %vm287, %v272, 0
  %291 = vmatprep.subr.bf16.mxu0 0
  %292 = vmatpush1.bf16.msra.mxu0 %v289
  %293 = vmatprep.subr.bf16.mxu0 0
  %294 = vmatpush1.bf16.msra.mxu0 0
  %295 = vmatprep.subr.bf16.mxu0 0
  %296 = vmatpush1.bf16.msra.mxu0 0
  %297 = vmatprep.subr.bf16.mxu0 0
  %298 = vmatpush1.bf16.msra.mxu0 0
  %299 = vmatprep.subr.bf16.mxu0 0
  %300 = vmatpush1.bf16.msra.mxu0 0
  %301 = vmatprep.subr.bf16.mxu0 0
  %302 = vmatpush1.bf16.msra.mxu0 0
  %303 = vmatprep.subr.bf16.mxu0 0
  %304 = vmatpush1.bf16.msra.mxu0 0
  %305 = vmatprep.subr.bf16.mxu0 0
  %306 = vmatpush1.bf16.msra.mxu0 0
  %307 = vmatprep.subr.bf16.mxu0 0
  %308 = vmatpush1.bf16.msra.mxu0 0
  %309 = vmatprep.subr.bf16.mxu0 0
  %310 = vmatpush1.bf16.msra.mxu0 0
  %311 = vmatprep.subr.bf16.mxu0 0
  %312 = vmatpush1.bf16.msra.mxu0 0
  %313 = vmatprep.subr.bf16.mxu0 0
  %314 = vmatpush1.bf16.msra.mxu0 0
  %315 = vmatprep.subr.bf16.mxu0 0
  %316 = vmatpush1.bf16.msra.mxu0 0
  %317 = vmatprep.subr.bf16.mxu0 0
  %318 = vmatpush1.bf16.msra.mxu0 0
  %319 = vmatprep.subr.bf16.mxu0 0
  %320 = vmatpush1.bf16.msra.mxu0 0
  %321 = vmatprep.subr.bf16.mxu0 0
  %322 = vmatpush1.bf16.msra.mxu0 0
  %323 = vmatprep.mubr.bf16.mxu0 0
  %324 = vmatmul.mubr.bf16.gmra.mrb[0].mxu0 %v282
  %v325 = vpop.f32.mrb[0].mxu0
  %v326 = vadd.f32 %v278, %v325
  %v327 = vpop.f32.mrb[0].mxu0
  %v328 = vpop.f32.mrb[0].mxu0
  %v329 = vadd.f32 %v278, %v328
  %v330 = vpop.f32.mrb[0].mxu0
  %331 = vmatprep.mubr.bf16.mxu0 0
  %332 = vmatmul.mubr.bf16.gmra.mrb[0].mxu0 %v285
  %v333 = vpop.f32.mrb[0].mxu0
  %v334 = vadd.f32 %v278, %v333
  %v335 = vpop.f32.mrb[0].mxu0
  %v336 = vpop.f32.mrb[0].mxu0
  %v337 = vadd.f32 %v278, %v336
  %v338 = vpop.f32.mrb[0].mxu0
  %339 = vdwg.mxu0
  %vm340 = vcmask 261120
  %v341 = vsel %vm340, %v326, 0.0
  %342 = vadd.xlane.f32.xlu0 %v341
  %v343 = vpop.xlane.xlu0 %342
  %v344 = vsel %vm340, %v329, 0.0
  %345 = vadd.xlane.f32.xlu0 %v344
  %v346 = vpop.xlane.xlu0 %345
  %v347 = vsel %vm340, %v334, 0.0
  %348 = vadd.xlane.f32.xlu0 %v347
  %v349 = vpop.xlane.xlu0 %348
  %v350 = vsel %vm340, %v337, 0.0
  %351 = vadd.xlane.f32.xlu0 %v350
  %v352 = vpop.xlane.xlu0 %351
  %v353 = vmul.f32 %v343, 0.03125
  %v354 = vmul.f32 %v346, 0.03125
  %v355 = vmul.f32 %v349, 0.03125
  %v356 = vmul.f32 %v352, 0.03125
  %v357 = vsub.f32 %v326, %v353
  %v358 = vsub.f32 %v329, %v354
  %v359 = vsub.f32 %v334, %v355
  %v360 = vsub.f32 %v337, %v356
  %v361 = vmul.f32 %v357, %v357
  %v362 = vmul.f32 %v358, %v358
  %v363 = vmul.f32 %v359, %v359
  %v364 = vmul.f32 %v360, %v360
  %v365 = vsel %vm340, %v361, 0.0
  %366 = vadd.xlane.f32.xlu0 %v365
  %v367 = vpop.xlane.xlu0 %366
  %v368 = vsel %vm340, %v362, 0.0
  %369 = vadd.xlane.f32.xlu0 %v368
  %v370 = vpop.xlane.xlu0 %369
  %v371 = vsel %vm340, %v363, 0.0
  %372 = vadd.xlane.f32.xlu0 %v371
  %v373 = vpop.xlane.xlu0 %372
  %v374 = vsel %vm340, %v364, 0.0
  %375 = vadd.xlane.f32.xlu0 %v374
  %v376 = vpop.xlane.xlu0 %375
  %v377 = vmul.f32 %v367, 0.03125
  %v378 = vmul.f32 %v370, 0.03125
  %v379 = vmul.f32 %v373, 0.03125
  %v380 = vmul.f32 %v376, 0.03125
  %v381 = vadd.f32 %v377, 1e-06
  %v382 = vadd.f32 %v378, 1e-06
  %v383 = vadd.f32 %v379, 1e-06
  %v384 = vadd.f32 %v380, 1e-06
  %v385 = vrsqrt.pop %v381
  %v386 = vrsqrt.pop %v382
  %v387 = vrsqrt.pop %v383
  %v388 = vrsqrt.pop %v384
  %v389 = vmul.f32 %v357, %v385
  %v390 = vmul.f32 %v358, %v386
  %v391 = vmul.f32 %v359, %v387
  %v392 = vmul.f32 %v360, %v388
  %v393 = vld [vmem:[%s4] sm:$0x1]
  %v395 = vlaneseq
  %v396 = vshrl.u32 %v395, 7
  %v397 = vsub.s32 0, %v396
  %v398 = vrot.slane %v393, %v397
  %v400 = vmul.f32 %v389, %v398
  %v401 = vmul.f32 %v390, %v398
  %v402 = vmul.f32 %v391, %v398
  %v403 = vmul.f32 %v392, %v398
  %v404 = vld [vmem:[%s5] sm:$0x1]
  %v406 = vlaneseq
  %v407 = vshrl.u32 %v406, 7
  %v408 = vsub.s32 0, %v407
  %v409 = vrot.slane %v404, %v408
  %v411 = vadd.f32 %v400, %v409
  %v412 = vadd.f32 %v401, %v409
  %v413 = vadd.f32 %v402, %v409
  %v414 = vadd.f32 %v403, %v409
  %v415 = vmul.f32 %v411, 0.70710677
  %v416 = vmul.f32 %v412, 0.70710677
  %v417 = vmul.f32 %v413, 0.70710677
  %v418 = vmul.f32 %v414, 0.70710677
  %v419 = vand.u32 2147483647, %v415
  %v420 = vand.u32 2147483647, %v416
  %v421 = vand.u32 2147483647, %v417
  %v422 = vand.u32 2147483647, %v418
  %v423 = vmul.f32 %v419, 0.3275911
  %v424 = vmul.f32 %v420, 0.3275911
  %v425 = vmul.f32 %v421, 0.3275911
  %v426 = vmul.f32 %v422, 0.3275911
  %v427 = vadd.f32 %v423, 1.0
  %v428 = vadd.f32 %v424, 1.0
  %v429 = vadd.f32 %v425, 1.0
  %v430 = vadd.f32 %v426, 1.0
  %v431 = vrcp.pop %v427
  %v432 = vrcp.pop %v428
  %v433 = vrcp.pop %v429
  %v434 = vrcp.pop %v430
  %v435 = vmul.f32 %v431, 1.0614054
  %v436 = vmul.f32 %v432, 1.0614054
  %v437 = vmul.f32 %v433, 1.0614054
  %v438 = vmul.f32 %v434, 1.0614054
  %v439 = vadd.f32 %v435, -1.4531521
  %v440 = vadd.f32 %v436, -1.4531521
  %v441 = vadd.f32 %v437, -1.4531521
  %v442 = vadd.f32 %v438, -1.4531521
  %v443 = vmul.f32 %v431, %v439
  %v444 = vmul.f32 %v432, %v440
  %v445 = vmul.f32 %v433, %v441
  %v446 = vmul.f32 %v434, %v442
  %v447 = vadd.f32 %v443, 1.4214138
  %v448 = vadd.f32 %v444, 1.4214138
  %v449 = vadd.f32 %v445, 1.4214138
  %v450 = vadd.f32 %v446, 1.4214138
  %v451 = vmul.f32 %v431, %v447
  %v452 = vmul.f32 %v432, %v448
  %v453 = vmul.f32 %v433, %v449
  %v454 = vmul.f32 %v434, %v450
  %v455 = vadd.f32 %v451, -0.28449672
  %v456 = vadd.f32 %v452, -0.28449672
  %v457 = vadd.f32 %v453, -0.28449672
  %v458 = vadd.f32 %v454, -0.28449672
  %v459 = vmul.f32 %v431, %v455
  %v460 = vmul.f32 %v432, %v456
  %v461 = vmul.f32 %v433, %v457
  %v462 = vmul.f32 %v434, %v458
  %v463 = vadd.f32 %v459, 0.2548296
  %v464 = vadd.f32 %v460, 0.2548296
  %v465 = vadd.f32 %v461, 0.2548296
  %v466 = vadd.f32 %v462, 0.2548296
  %v467 = vmul.f32 %v431, %v463
  %v468 = vmul.f32 %v432, %v464
  %v469 = vmul.f32 %v433, %v465
  %v470 = vmul.f32 %v434, %v466
  %v471 = vsub.f32 0.0, %v419
  %v472 = vsub.f32 0.0, %v420
  %v473 = vsub.f32 0.0, %v421
  %v474 = vsub.f32 0.0, %v422
  %v475 = vmul.f32 %v471, %v419
  %v476 = vmul.f32 %v472, %v420
  %v477 = vmul.f32 %v473, %v421
  %v478 = vmul.f32 %v474, %v422
  %v479 = vmul.f32 %v475, 1.442695
  %v480 = vpow.pop %v479
  %v481 = vmul.f32 %v476, 1.442695
  %v482 = vpow.pop %v481
  %v483 = vmul.f32 %v477, 1.442695
  %v484 = vpow.pop %v483
  %v485 = vmul.f32 %v478, 1.442695
  %v486 = vpow.pop %v485
  %v487 = vmul.f32 %v467, %v480
  %v488 = vmul.f32 %v468, %v482
  %v489 = vmul.f32 %v469, %v484
  %v490 = vmul.f32 %v470, %v486
  %v491 = vsub.f32 1.0, %v487
  %v492 = vsub.f32 1.0, %v488
  %v493 = vsub.f32 1.0, %v489
  %v494 = vsub.f32 1.0, %v490
  %vm495 = vcmp.ge.f32.partialorder %v415, 0.0
  %vm496 = vcmp.ge.f32.partialorder %v416, 0.0
  %vm497 = vcmp.ge.f32.partialorder %v417, 0.0
  %vm498 = vcmp.ge.f32.partialorder %v418, 0.0
  %v499 = vsub.f32 0.0, %v491
  %v500 = vsub.f32 0.0, %v492
  %v501 = vsub.f32 0.0, %v493
  %v502 = vsub.f32 0.0, %v494
  %v503 = vsel %vm495, %v491, %v499
  %v504 = vsel %vm496, %v492, %v500
  %v505 = vsel %vm497, %v493, %v501
  %v506 = vsel %vm498, %v494, %v502
  %v507 = vmul.f32 %v411, 0.5
  %v508 = vmul.f32 %v412, 0.5
  %v509 = vmul.f32 %v413, 0.5
  %v510 = vmul.f32 %v414, 0.5
  %v511 = vadd.f32 %v503, 1.0
  %v512 = vadd.f32 %v504, 1.0
  %v513 = vadd.f32 %v505, 1.0
  %v514 = vadd.f32 %v506, 1.0
  %v515 = vmul.f32 %v507, %v511
  %v516 = vmul.f32 %v508, %v512
  %v517 = vmul.f32 %v509, %v513
  %v518 = vmul.f32 %v510, %v514
  %v519 = vld [vmem:[%s6] sm:$0x1]
  %v520 = vld [vmem:[%s6 + $0x1] sm:$0x1]
  %vm521 = vcmask 253952
  %522 = vst.msk [vmem:[%s7] sm:$0x1] %vm521, %v519
  %523 = vst.msk [vmem:[%s7 + $0x38] sm:$0x1] %vm521, %v520
  %524 = vst.msk [vmem:[%s7 + $0x1] sm:$0xff] %vm340, %v515
  %525 = vst.msk [vmem:[%s7 + $0x9] sm:$0xff] %vm340, %v516
  %526 = vst.msk [vmem:[%s7 + $0x39] sm:$0xff] %vm340, %v517
  %527 = vst.msk [vmem:[%s7 + $0x41] sm:$0xff] %vm340, %v518
  %528 = vst.msk [vmem:[%s7 + $0x11] sm:$0xff] %vm340, %v515
  %529 = vst.msk [vmem:[%s7 + $0x19] sm:$0xff] %vm340, %v516
  %530 = vst.msk [vmem:[%s7 + $0x49] sm:$0xff] %vm340, %v517
  %531 = vst.msk [vmem:[%s7 + $0x51] sm:$0xff] %vm340, %v518
  %532 = vst.msk [vmem:[%s7 + $0x21] sm:$0xff] %vm340, %v515
  %533 = vst.msk [vmem:[%s7 + $0x29] sm:$0xff] %vm340, %v516
  %534 = vst.msk [vmem:[%s7 + $0x59] sm:$0xff] %vm340, %v517
  %535 = vst.msk [vmem:[%s7 + $0x61] sm:$0xff] %vm340, %v518
  // Predicated region
  $region30: #{tpu_custom_call.1} parent=0 // pred_check
    _
  $region31: #{tpu_custom_call.1} parent=0 // pred_check_branch
    %537 = sbr.rel (0) target = $region33
  $region32: #{tpu_custom_call.1} parent=0 // pred_region
    _
  $region33: #{tpu_custom_call.1} parent=0 // pred_fallthru
    _
  // Predicated region
  $region34: #{tpu_custom_call.1} parent=0 // pred_check
    _
  $region35: #{tpu_custom_call.1} parent=0 // pred_check_branch
    %539 = sbr.rel (0) target = $region37
  $region36: #{tpu_custom_call.1} parent=0 // pred_region
    _
  $region37: #{tpu_custom_call.1} parent=0 // pred_fallthru
    _

</llo_original>
